<compile_context>
chip_gen: v7x
topology: tpu7x:2x2x1
jax: 0.10.0
libtpu: 0.0.40
codegen_flags: <defaults>
</compile_context>

<pallas_src>
import jax
import jax.numpy as jnp
from jax import lax
from jax.experimental import pallas as pl
from jax.experimental.pallas import tpu as pltpu


def cbow_kernel(h_ref, wout_ref, out_ref):
    """One grid step computes logits for one vocab tile.

    h_ref   : (Bp, Dp)  mean context embedding (VMEM-resident across steps)
    wout_ref: (TV, Dp)  streamed tile of the output embedding table
    out_ref : (Bp, TV)  logits tile (batch on sublanes, vocab on lanes)
    """
    # Contract the D axis of both operands -> native trans_b MXU matmul,
    # f32 accumulation regardless of input dtype.
    out_ref[...] = lax.dot_general(
        h_ref[...],
        wout_ref[...],
        dimension_numbers=(((1,), (1,)), ((), ())),
        preferred_element_type=jnp.float32,
    )


def _round_up(x, m):
    return ((x + m - 1) // m) * m


def _vmem_capacity_bytes():
    """Generation-aware VMEM capacity; conservative fallback = v7x (64 MiB)."""
    try:
        cap = int(pltpu.get_tpu_info().vmem_capacity_bytes)
        if cap > 0:
            return cap
    except Exception:
        pass
    return 64 * 1024 * 1024


def _pick_tv(vocab_padded, bp, dp, w_itemsize, h_itemsize):
    """Largest multiple-of-128 vocab tile whose pipeline footprint fits a
    quarter of physical VMEM (leaves room for megacore halves / headroom),
    preferring >= 2 tiles so v7x's two TensorCores both get work."""
    budget = _vmem_capacity_bytes() // 4
    resident = 2 * bp * dp * h_itemsize                 # resident h (conservative 2x)
    per_tv = 2 * dp * w_itemsize + 2 * bp * 4           # 2x w tile + 2x f32 out tile
    tv = max(128, ((budget - resident) // per_tv) // 128 * 128)
    tv = min(tv, vocab_padded)
    if tv >= vocab_padded and vocab_padded > 128:
        # Split into (at least) two tiles for the megacore parallel axis.
        tv = max(128, _round_up((vocab_padded + 1) // 2, 128))
    return tv


def cbow_forward(x_ids, w_in, w_out, *, weight_dtype=jnp.bfloat16, tv=None):
    """CBOW forward.

    x_ids: (B, C) int32 token ids
    w_in, w_out: (V, D) f32 embedding tables
    weight_dtype: dtype used for the streamed w_out table AND the activation
        fed to the MXU (accumulation is always f32). bf16 default = 2x less
        HBM traffic on this memory-bound kernel; pass jnp.float32 for exact.
    returns {'out': (B, V) f32 logits}
    """
    B, C = x_ids.shape
    V, D = w_in.shape
    assert w_out.shape == (V, D)

    # Gather + context mean in f32 (glue math, fused by XLA outside the kernel).
    h = jnp.take(w_in, x_ids, axis=0).mean(axis=1)  # (B, D) f32

    # Pad batch to a sublane multiple and D to a lane multiple (vreg-dense).
    Bp = _round_up(B, 8)
    Dp = _round_up(D, 128)
    if (Bp, Dp) != (B, D):
        h = jnp.pad(h, ((0, Bp - B), (0, Dp - D)))
    w = w_out if Dp == D else jnp.pad(w_out, ((0, 0), (0, Dp - D)))

    h = h.astype(weight_dtype)
    w = w.astype(weight_dtype)
    w_itemsize = jnp.dtype(weight_dtype).itemsize

    # Vocab tile selection + padding to a whole (and even, when >1) tile count.
    if tv is None:
        tv = _pick_tv(_round_up(V, 128), Bp, Dp, w_itemsize, w_itemsize)
    tv = _round_up(int(tv), 128)
    num_tiles = -(-V // tv)                      # ceil
    if num_tiles > 1 and num_tiles % 2 == 1:
        num_tiles += 1                           # even tile count for v7x megacore
    Vp = num_tiles * tv
    if Vp != V:
        w = jnp.pad(w, ((0, Vp - V), (0, 0)))    # zero rows -> zero logits, sliced off

    # Pipeline footprint (for an explicit scoped-VMEM limit; v5e default 16 MiB
    # would otherwise cap the tile size).
    footprint = 2 * tv * Dp * w_itemsize + 2 * Bp * tv * 4 + 2 * Bp * Dp * w_itemsize
    cap = _vmem_capacity_bytes()
    vmem_limit = int(min(cap, max(2 * footprint, 16 * 1024 * 1024)))

    cost = pl.CostEstimate(
        flops=2 * Bp * Vp * Dp,
        transcendentals=0,
        bytes_accessed=Vp * Dp * w_itemsize + Bp * Dp * w_itemsize + Bp * Vp * 4,
    )

    out = pl.pallas_call(
        cbow_kernel,
        out_shape=jax.ShapeDtypeStruct((Bp, Vp), jnp.float32),
        grid_spec=pltpu.PrefetchScalarGridSpec(
            num_scalar_prefetch=0,
            grid=(Vp // tv,),
            in_specs=[
                # Constant block index -> activation stays resident in VMEM.
                pl.BlockSpec((Bp, Dp), lambda j: (0, 0)),
                # Streamed (double-buffered) vocab tile of the output table.
                pl.BlockSpec((tv, Dp), lambda j: (j, 0)),
            ],
            out_specs=pl.BlockSpec((Bp, tv), lambda j: (0, j)),
        ),
        compiler_params=pltpu.CompilerParams(
            dimension_semantics=("parallel",),
            vmem_limit_bytes=vmem_limit,
        ),
        cost_estimate=cost,
    )(h, w)

    out = out[:B, :V]
    return {"out": out}


if __name__ == "__main__":
    # Deliberately non-128-friendly shapes to exercise the vocab/D padding paths.
    vocab_size = 1000
    embedding_dim = 100
    batch = 8
    context = 4

    key = jax.random.PRNGKey(0)
    k_in, k_out, k_ids = jax.random.split(key, 3)

    # nn.Embedding initializes weights ~ N(0, 1).
    w_in = jax.random.normal(k_in, (vocab_size, embedding_dim), dtype=jnp.float32)
    w_out = jax.random.normal(k_out, (vocab_size, embedding_dim), dtype=jnp.float32)
    x_ids = jax.random.randint(k_ids, (batch, context), 0, vocab_size, dtype=jnp.int32)

    ref = jnp.take(w_in, x_ids, axis=0).mean(axis=1) @ w_out.T

    # Exact (f32 weight) path: tight tolerance vs the pure-JAX reference.
    out_f32 = jax.block_until_ready(
        cbow_forward(x_ids, w_in, w_out, weight_dtype=jnp.float32)["out"]
    )
    assert out_f32.shape == (batch, vocab_size)
    assert jnp.allclose(out_f32, ref, atol=1e-4, rtol=1e-4), "f32 mismatch vs reference"

    # Default (bf16 weight) path: the HBM-bandwidth configuration, looser tolerance.
    out_default = jax.block_until_ready(cbow_forward(x_ids, w_in, w_out)["out"])
    assert out_default.shape == (batch, vocab_size)
    assert jnp.allclose(out_default, ref, atol=5e-1, rtol=5e-2), "bf16 mismatch vs reference"

    print("KERNEL_OK")
</pallas_src>

<mosaic_0001>
module attributes {stable_mosaic.version = 11 : i64} {
  func.func @cbow_kernel(%arg0: i32, %arg1: memref<8x128xf32, #tpu.memory_space<vmem>>, %arg2: memref<512x128xf32, #tpu.memory_space<vmem>>, %arg3: memref<8x512xf32, #tpu.memory_space<vmem>>) attributes {dimension_semantics = [#tpu.dimension_semantics<parallel>], iteration_bounds = array<i64: 2>, scalar_prefetch = 0 : i64, scratch_operands = 0 : i64, tpu.core_type = #tpu.core_type<tc>, window_params = [{pipeline_mode = #tpu.pipeline_mode<synchronous>, transform_indices = @transform_0, window_bounds = array<i64: 8, 128>}, {transform_indices = @transform_1, window_bounds = array<i64: 512, 128>}, {transform_indices = @transform_2, window_bounds = array<i64: 8, 512>}]} {
    %c0 = arith.constant 0 : index
    %c0_0 = arith.constant 0 : index
    %0 = vector.load %arg1[%c0, %c0_0] : memref<8x128xf32, #tpu.memory_space<vmem>>, vector<8x128xf32>
    %c0_1 = arith.constant 0 : index
    %c0_2 = arith.constant 0 : index
    %1 = vector.load %arg2[%c0_1, %c0_2] : memref<512x128xf32, #tpu.memory_space<vmem>>, vector<512x128xf32>
    %cst = arith.constant dense<0.000000e+00> : vector<8x512xf32>
    %2 = tpu.matmul %0, %1, %cst {dimension_numbers = #tpu.dot_dimension_numbers<[1], [1], [0], [0], [0, 0, 1, 0], [], []>} : vector<8x128xf32>, vector<512x128xf32>, vector<8x512xf32> -> vector<8x512xf32>
    %c0_3 = arith.constant 0 : index
    %c0_4 = arith.constant 0 : index
    %3 = vector.load %arg3[%c0_3, %c0_4] : memref<8x512xf32, #tpu.memory_space<vmem>>, vector<8x512xf32>
    tpu.vector_store %arg3[%c0_3, %c0_4], %2 {strides = array<i32>} : memref<8x512xf32, #tpu.memory_space<vmem>>, vector<8x512xf32>,
    return
  }
  func.func @transform_0(%arg0: i32) -> (i32, i32) {
    %c0_i32 = arith.constant 0 : i32
    %c0_i32_0 = arith.constant 0 : i32
    %c0_i32_1 = arith.constant 0 : i32
    return %c0_i32, %c0_i32_0 : i32, i32
  }
  func.func @transform_1(%arg0: i32) -> (i32, i32) {
    %c0_i32 = arith.constant 0 : i32
    %c0_i32_0 = arith.constant 0 : i32
    return %arg0, %c0_i32 : i32, i32
  }
  func.func @transform_2(%arg0: i32) -> (i32, i32) {
    %c0_i32 = arith.constant 0 : i32
    %c0_i32_0 = arith.constant 0 : i32
    return %c0_i32, %arg0 : i32, i32
  }
}

</mosaic_0001>

<llo_original>
// kernel: tpu_custom_call.1
$region0: #{tpu_custom_call.1}
  #allocation0 [shape = 'u32[]', space=smem, size = 0x4, offset = 0x4, fixed_abs, tag = 'smem constant byte address 0x4 - core index']
  #allocation1 [shape = 'u32[144,128]{1,0:T(1,128)}', space=vmem, size = 0x12000, scoped, tag = 'internal scratch']
  %s0 = inlined_call_operand.hbm [shape: f32[8,128], index: 0, kind: input, shape index: {}]
  %s1 = inlined_call_operand.hbm [shape: f32[1024,128], index: 1, kind: input, shape index: {}]
  %s2 = inlined_call_operand.hbm [shape: f32[8,1024], index: 2, kind: output, shape index: {}]
  %s3 = sld [smem:[#allocation0]]
  $region49: #{tpu_custom_call.1} parent=0
    _
  %s5 = ssub.s32 1, %s3
  %s6 = scalar_select 0, %s5, %s3
  $region1: #{tpu_custom_call.1} parent=0
    #allocation2 [shape = 'u8[4096]{0}', space=vmem, size = 0x1000, scoped, tag = 'input window, operand 0, single buffered']
    #allocation3 [shape = 's32[2]{0}', space=sflag, size = 0x8, scoped, tag = 'scoped memory for tpu_custom_call.1']
    #allocation4 [shape = 's32[2]{0}', space=sflag, size = 0x8, scoped, tag = 'scoped memory for tpu_custom_call.1']
    #allocation5 [shape = 'u8[524288]{0}', space=vmem, size = 0x80000, scoped, tag = 'input window, operand 1']
    #allocation6 [shape = 's32[2]{0}', space=sflag, size = 0x8, scoped, tag = 'scoped memory for tpu_custom_call.1']
    #allocation7 [shape = 'u8[32768]{0}', space=vmem, size = 0x8000, scoped, tag = 'output window, operand 0']
    %7 = vsyncpa [#allocation3], 0
    %8 = vsyncpa [#allocation6], 0
    %s9 = scalar_lea.sflag [#allocation6], 1
    %10 = vsyncpa %s9, 0
    %11 = vsyncpa [#allocation4], 0
    %s12 = scalar_lea.sflag [#allocation4], 1
    %13 = vsyncpa %s12, 0
    loop: start=0, step=1, limit=4
    $region2: #{tpu_custom_call.1} parent=1 // loop_pre_header
      _
    $region3: #{tpu_custom_call.1} parent=1 // loop_header
      %s15 = sphi 0, %s19
      %p16 = scmp.ge.s32.totalorder %s15, 4
      %s23 = sphi 0, %s23
      %s25 = sphi 0, %s23
      %s26 = sphi 0, %s25
      %s40 = sphi 0, %s26
      %s46 = sphi 0, %s48
      %s49 = sphi 0, %s46
      %s50 = sphi 0, %s49
      %s66 = sphi 0, %s50
      %s72 = sphi 0, %s74
      %s75 = sphi 0, %s72
      %s76 = sphi 0, %s75
      %s92 = sphi 0, %s76
    $region4: #{tpu_custom_call.1} parent=1 // loop_header_branch
      %18 = sbr.rel (%p16) target = $region8
    $region5: #{tpu_custom_call.1} parent=1 // loop_body
      %s20 = ssub.s32 %s15, 1
      %s21 = ssub.s32 %s15, 2
      %s22 = sadd.s32 %s15, 1
      %s24 = sadd.s32 %s23, 1
      %p27 = scmp.eq.s32.totalorder %s15, 1
      %p28 = scmp.ne.s32.totalorder %s23, %s25
      %p29 = scmp.eq.s32.totalorder %s15, 0
      %p30 = por %p28, %p29
      %p31 = scmp.ne.s32.totalorder %s23, %s25
      %p32 = scmp.eq.s32.totalorder %s20, 1
      %p33 = por %p31, %p32
      %p34 = scmp.ne.s32.totalorder %s25, %s26
      %p35 = scmp.eq.s32.totalorder %s20, 0
      %p36 = por %p34, %p35
      %p37 = scmp.ne.s32.totalorder %s25, %s26
      %p38 = scmp.eq.s32.totalorder %s21, 1
      %p39 = por %p37, %p38
      %p41 = scmp.ne.s32.totalorder %s26, %s40
      %p42 = scmp.eq.s32.totalorder %s21, 0
      %p43 = por %p41, %p42
      %s44 = ssub.s32 %s15, %s22
      %p45 = scmp.eq.s32.totalorder %s44, 0
      %s47 = sadd.s32 %s46, 1
      %s48 = scalar_select %p45, %s46, %s47
      %p51 = pneg %p45
      %p52 = scmp.eq.s32.totalorder %s15, 1
      %p53 = por %p51, %p52
      %p54 = scmp.ne.s32.totalorder %s46, %s49
      %p55 = scmp.eq.s32.totalorder %s15, 0
      %p56 = por %p54, %p55
      %p57 = scmp.ne.s32.totalorder %s46, %s49
      %p58 = scmp.eq.s32.totalorder %s20, 1
      %p59 = por %p57, %p58
      %p60 = scmp.ne.s32.totalorder %s49, %s50
      %p61 = scmp.eq.s32.totalorder %s20, 0
      %p62 = por %p60, %p61
      %p63 = scmp.ne.s32.totalorder %s49, %s50
      %p64 = scmp.eq.s32.totalorder %s21, 1
      %p65 = por %p63, %p64
      %p67 = scmp.ne.s32.totalorder %s50, %s66
      %p68 = scmp.eq.s32.totalorder %s21, 0
      %p69 = por %p67, %p68
      %s70 = ssub.s32 %s15, %s22
      %p71 = scmp.eq.s32.totalorder %s70, 0
      %s73 = sadd.s32 %s72, 1
      %s74 = scalar_select %p71, %s72, %s73
      %p77 = pneg %p71
      %p78 = scmp.eq.s32.totalorder %s15, 1
      %p79 = por %p77, %p78
      %p80 = scmp.ne.s32.totalorder %s72, %s75
      %p81 = scmp.eq.s32.totalorder %s15, 0
      %p82 = por %p80, %p81
      %p83 = scmp.ne.s32.totalorder %s72, %s75
      %p84 = scmp.eq.s32.totalorder %s20, 1
      %p85 = por %p83, %p84
      %p86 = scmp.ne.s32.totalorder %s75, %s76
      %p87 = scmp.eq.s32.totalorder %s20, 0
      %p88 = por %p86, %p87
      %p89 = scmp.ne.s32.totalorder %s75, %s76
      %p90 = scmp.eq.s32.totalorder %s21, 1
      %p91 = por %p89, %p90
      %p93 = scmp.ne.s32.totalorder %s76, %s92
      %p94 = scmp.eq.s32.totalorder %s21, 0
      %p95 = por %p93, %p94
      %p96 = scmp.le.s32.totalorder 1, %s15
      %p97 = scmp.lt.s32.totalorder %s15, 3
      %p98 = pnand %p96, %p97
      %p99 = pneg %p98
      // Predicated region
      $region9: #{tpu_custom_call.1} parent=5 // pred_check
        _
      $region10: #{tpu_custom_call.1} parent=5 // pred_check_branch
        %101 = sbr.rel (%p98) target = $region12
      $region11: #{tpu_custom_call.1} parent=5 // pred_region
        %s102 = ssub.s32 %s15, 1
        // Predicated region
        $region13: #{tpu_custom_call.1} parent=11 // pred_check
          %p103 = pneg %p36
        $region14: #{tpu_custom_call.1} parent=11 // pred_check_branch
          %105 = sbr.rel (%p103) target = $region16
        $region15: #{tpu_custom_call.1} parent=11 // pred_region
          %s107 = ssub.s32 128, 128
          %108 = vsyncadd [#allocation3], %s107
          %s110 = sshll.u32 [#allocation2], 4
          %s111 = int_to_ptr.vmem [resolvable:$true] %s110
          %113 = dma.hbm_to_vmem [thread:$0]  %s0, 128, %s111, [#allocation3]
        $region16: #{tpu_custom_call.1} parent=11 // pred_fallthru
          _
      $region12: #{tpu_custom_call.1} parent=5 // pred_fallthru
        _
      %p114 = scmp.lt.s32.totalorder %s15, 2
      // Predicated region
      $region17: #{tpu_custom_call.1} parent=5 // pred_check
        %p115 = pneg %p114
      $region18: #{tpu_custom_call.1} parent=5 // pred_check_branch
        %117 = sbr.rel (%p115) target = $region20
      $region19: #{tpu_custom_call.1} parent=5 // pred_region
        // Predicated region
        $region21: #{tpu_custom_call.1} parent=19 // pred_check
          %p118 = pneg %p56
        $region22: #{tpu_custom_call.1} parent=19 // pred_check_branch
          %120 = sbr.rel (%p118) target = $region24
        $region23: #{tpu_custom_call.1} parent=19 // pred_region
          %s121 = sand.u32 %s46, 1
          %s122 = scalar_lea.sflag [#allocation6], %s121
          %s123 = sand.u32 %s46, 1
          %s124 = smul.addr %s123, 512
          %s125 = scalar_lea.vmem [#allocation5], %s124
          %s126 = smul.u32 64, %s15
          %s128 = ssub.s32 8192, 8192
          %129 = vsyncadd %s122, %s128
          %s130 = smul.addr %s126, 128
          %s131 = scalar_lea.hbm %s1, %s130
          %s132 = sshll.u32 %s125, 4
          %s133 = int_to_ptr.vmem [resolvable:$true] %s132
          %138 = dma.hbm_to_vmem [thread:$0]  %s131, 8192, %s133, %s122, 128, 128, 8
        $region24: #{tpu_custom_call.1} parent=19 // pred_fallthru
          _
      $region20: #{tpu_custom_call.1} parent=5 // pred_fallthru
        _
      %p139 = scmp.le.s32.totalorder 1, %s15
      %p140 = scmp.lt.s32.totalorder %s15, 3
      %p141 = pnand %p139, %p140
      %p142 = pneg %p141
      // Predicated region
      $region25: #{tpu_custom_call.1} parent=5 // pred_check
        _
      $region26: #{tpu_custom_call.1} parent=5 // pred_check_branch
        %144 = sbr.rel (%p141) target = $region28
      $region27: #{tpu_custom_call.1} parent=5 // pred_region
        %s145 = ssub.s32 %s15, 1
        // Predicated region
        $region29: #{tpu_custom_call.1} parent=27 // pred_check
          %p146 = pneg %p36
        $region30: #{tpu_custom_call.1} parent=27 // pred_check_branch
          %148 = sbr.rel (%p146) target = $region32
        $region31: #{tpu_custom_call.1} parent=27 // pred_region
          %149 = dma.done [#allocation3], 128
        $region32: #{tpu_custom_call.1} parent=27 // pred_fallthru
          _
        %s150 = sand.u32 %s49, 1
        %s151 = scalar_lea.sflag [#allocation6], %s150
        %s152 = sand.u32 %s49, 1
        %s153 = smul.addr %s152, 512
        %s154 = scalar_lea.vmem [#allocation5], %s153
        // Predicated region
        $region33: #{tpu_custom_call.1} parent=27 // pred_check
          %p155 = pneg %p62
        $region34: #{tpu_custom_call.1} parent=27 // pred_check_branch
          %157 = sbr.rel (%p155) target = $region36
        $region35: #{tpu_custom_call.1} parent=27 // pred_region
          %158 = dma.done %s151, 8192
        $region36: #{tpu_custom_call.1} parent=27 // pred_fallthru
          _
        %p159 = pneg %p36
        %p160 = pneg %p33
        %s161 = sand.u32 %s49, 1
        %s162 = scalar_lea.sflag [#allocation6], %s161
        %s163 = sand.u32 %s49, 1
        %s164 = smul.addr %s163, 512
        %s165 = scalar_lea.vmem [#allocation5], %s164
        %p166 = pneg %p62
        %p167 = pneg %p59
        %p168 = pneg %p88
        %p169 = pneg %p85
        %s170 = sand.u32 %s75, 1
        %s171 = scalar_lea.sflag [#allocation4], %s170
        %s172 = sand.u32 %s75, 1
        %s173 = smul.addr %s172, 32
        %s174 = scalar_lea.vmem [#allocation7], %s173
        %s175 = smul.u32 64, %s20
        %s176 = smul.u32 4, %s20
        %v177 = vld [vmem:[#allocation2] sm:$0xff]
        %v178 = vld [vmem:[%s154] sm:$0xff]
        %v179 = vld [vmem:[%s154 + $0x8] sm:$0xff]
        %v180 = vld [vmem:[%s154 + $0x10] sm:$0xff]
        %v181 = vld [vmem:[%s154 + $0x18] sm:$0xff]
        %v182 = vld [vmem:[%s154 + $0x20] sm:$0xff]
        %v183 = vld [vmem:[%s154 + $0x28] sm:$0xff]
        %v184 = vld [vmem:[%s154 + $0x30] sm:$0xff]
        %v185 = vld [vmem:[%s154 + $0x38] sm:$0xff]
        %v186 = vld [vmem:[%s154 + $0x40] sm:$0xff]
        %v187 = vld [vmem:[%s154 + $0x48] sm:$0xff]
        %v188 = vld [vmem:[%s154 + $0x50] sm:$0xff]
        %v189 = vld [vmem:[%s154 + $0x58] sm:$0xff]
        %v190 = vld [vmem:[%s154 + $0x60] sm:$0xff]
        %v191 = vld [vmem:[%s154 + $0x68] sm:$0xff]
        %v192 = vld [vmem:[%s154 + $0x70] sm:$0xff]
        %v193 = vld [vmem:[%s154 + $0x78] sm:$0xff]
        %v194 = vld [vmem:[%s154 + $0x80] sm:$0xff]
        %v195 = vld [vmem:[%s154 + $0x88] sm:$0xff]
        %v196 = vld [vmem:[%s154 + $0x90] sm:$0xff]
        %v197 = vld [vmem:[%s154 + $0x98] sm:$0xff]
        %v198 = vld [vmem:[%s154 + $0xa0] sm:$0xff]
        %v199 = vld [vmem:[%s154 + $0xa8] sm:$0xff]
        %v200 = vld [vmem:[%s154 + $0xb0] sm:$0xff]
        %v201 = vld [vmem:[%s154 + $0xb8] sm:$0xff]
        %v202 = vld [vmem:[%s154 + $0xc0] sm:$0xff]
        %v203 = vld [vmem:[%s154 + $0xc8] sm:$0xff]
        %v204 = vld [vmem:[%s154 + $0xd0] sm:$0xff]
        %v205 = vld [vmem:[%s154 + $0xd8] sm:$0xff]
        %v206 = vld [vmem:[%s154 + $0xe0] sm:$0xff]
        %v207 = vld [vmem:[%s154 + $0xe8] sm:$0xff]
        %v208 = vld [vmem:[%s154 + $0xf0] sm:$0xff]
        %v209 = vld [vmem:[%s154 + $0xf8] sm:$0xff]
        %v210 = vld [vmem:[%s154 + $0x100] sm:$0xff]
        %v211 = vld [vmem:[%s154 + $0x108] sm:$0xff]
        %v212 = vld [vmem:[%s154 + $0x110] sm:$0xff]
        %v213 = vld [vmem:[%s154 + $0x118] sm:$0xff]
        %v214 = vld [vmem:[%s154 + $0x120] sm:$0xff]
        %v215 = vld [vmem:[%s154 + $0x128] sm:$0xff]
        %v216 = vld [vmem:[%s154 + $0x130] sm:$0xff]
        %v217 = vld [vmem:[%s154 + $0x138] sm:$0xff]
        %v218 = vld [vmem:[%s154 + $0x140] sm:$0xff]
        %v219 = vld [vmem:[%s154 + $0x148] sm:$0xff]
        %v220 = vld [vmem:[%s154 + $0x150] sm:$0xff]
        %v221 = vld [vmem:[%s154 + $0x158] sm:$0xff]
        %v222 = vld [vmem:[%s154 + $0x160] sm:$0xff]
        %v223 = vld [vmem:[%s154 + $0x168] sm:$0xff]
        %v224 = vld [vmem:[%s154 + $0x170] sm:$0xff]
        %v225 = vld [vmem:[%s154 + $0x178] sm:$0xff]
        %v226 = vld [vmem:[%s154 + $0x180] sm:$0xff]
        %v227 = vld [vmem:[%s154 + $0x188] sm:$0xff]
        %v228 = vld [vmem:[%s154 + $0x190] sm:$0xff]
        %v229 = vld [vmem:[%s154 + $0x198] sm:$0xff]
        %v230 = vld [vmem:[%s154 + $0x1a0] sm:$0xff]
        %v231 = vld [vmem:[%s154 + $0x1a8] sm:$0xff]
        %v232 = vld [vmem:[%s154 + $0x1b0] sm:$0xff]
        %v233 = vld [vmem:[%s154 + $0x1b8] sm:$0xff]
        %v234 = vld [vmem:[%s154 + $0x1c0] sm:$0xff]
        %v235 = vld [vmem:[%s154 + $0x1c8] sm:$0xff]
        %v236 = vld [vmem:[%s154 + $0x1d0] sm:$0xff]
        %v237 = vld [vmem:[%s154 + $0x1d8] sm:$0xff]
        %v238 = vld [vmem:[%s154 + $0x1e0] sm:$0xff]
        %v239 = vld [vmem:[%s154 + $0x1e8] sm:$0xff]
        %v240 = vld [vmem:[%s154 + $0x1f0] sm:$0xff]
        %v241 = vld [vmem:[%s154 + $0x1f8] sm:$0xff]
        %242 = vmatprep.subr.mxu0 0.0
        %243 = vmatpush1.xpose.msra.mxu0 %v178
        %244 = vmatprep.subr.mxu0 0.0
        %245 = vmatpush1.xpose.msra.mxu0 %v179
        %246 = vmatprep.subr.mxu0 0.0
        %247 = vmatpush1.xpose.msra.mxu0 %v180
        %248 = vmatprep.subr.mxu0 0.0
        %249 = vmatpush1.xpose.msra.mxu0 %v181
        %250 = vmatprep.subr.mxu0 0.0
        %251 = vmatpush1.xpose.msra.mxu0 %v182
        %252 = vmatprep.subr.mxu0 0.0
        %253 = vmatpush1.xpose.msra.mxu0 %v183
        %254 = vmatprep.subr.mxu0 0.0
        %255 = vmatpush1.xpose.msra.mxu0 %v184
        %256 = vmatprep.subr.mxu0 0.0
        %257 = vmatpush1.xpose.msra.mxu0 %v185
        %258 = vmatprep.subr.mxu0 0.0
        %259 = vmatpush1.xpose.msra.mxu0 %v186
        %260 = vmatprep.subr.mxu0 0.0
        %261 = vmatpush1.xpose.msra.mxu0 %v187
        %262 = vmatprep.subr.mxu0 0.0
        %263 = vmatpush1.xpose.msra.mxu0 %v188
        %264 = vmatprep.subr.mxu0 0.0
        %265 = vmatpush1.xpose.msra.mxu0 %v189
        %266 = vmatprep.subr.mxu0 0.0
        %267 = vmatpush1.xpose.msra.mxu0 %v190
        %268 = vmatprep.subr.mxu0 0.0
        %269 = vmatpush1.xpose.msra.mxu0 %v191
        %270 = vmatprep.subr.mxu0 0.0
        %271 = vmatpush1.xpose.msra.mxu0 %v192
        %272 = vmatprep.subr.mxu0 0.0
        %273 = vmatpush1.xpose.msra.mxu0 %v193
        %274 = vmatprep.subr.mxu0 0.0
        %275 = vmatpush1.xpose.msra.mxu0 %v194
        %276 = vmatprep.subr.mxu0 0.0
        %277 = vmatpush1.xpose.msra.mxu0 %v195
        %278 = vmatprep.subr.mxu0 0.0
        %279 = vmatpush1.xpose.msra.mxu0 %v196
        %280 = vmatprep.subr.mxu0 0.0
        %281 = vmatpush1.xpose.msra.mxu0 %v197
        %282 = vmatprep.subr.mxu0 0.0
        %283 = vmatpush1.xpose.msra.mxu0 %v198
        %284 = vmatprep.subr.mxu0 0.0
        %285 = vmatpush1.xpose.msra.mxu0 %v199
        %286 = vmatprep.subr.mxu0 0.0
        %287 = vmatpush1.xpose.msra.mxu0 %v200
        %288 = vmatprep.subr.mxu0 0.0
        %289 = vmatpush1.xpose.msra.mxu0 %v201
        %290 = vmatprep.subr.mxu0 0.0
        %291 = vmatpush1.xpose.msra.mxu0 %v202
        %292 = vmatprep.subr.mxu0 0.0
        %293 = vmatpush1.xpose.msra.mxu0 %v203
        %294 = vmatprep.subr.mxu0 0.0
        %295 = vmatpush1.xpose.msra.mxu0 %v204
        %296 = vmatprep.subr.mxu0 0.0
        %297 = vmatpush1.xpose.msra.mxu0 %v205
        %298 = vmatprep.subr.mxu0 0.0
        %299 = vmatpush1.xpose.msra.mxu0 %v206
        %300 = vmatprep.subr.mxu0 0.0
        %301 = vmatpush1.xpose.msra.mxu0 %v207
        %302 = vmatprep.subr.mxu0 0.0
        %303 = vmatpush1.xpose.msra.mxu0 %v208
        %304 = vmatprep.subr.mxu0 0.0
        %305 = vmatpush1.xpose.msra.mxu0 %v209
        %306 = vmatprep.mubr.f32.mxu0 0.0
        %307 = vmatmul.mubr.f32.gmra.mrb[0].mxu0 %v177
        %v308 = vpop.f32.mrb[0].mxu0
        %v309 = vadd.f32 0.0, %v308
        %v310 = vpop.f32.mrb[0].mxu0
        %v311 = vadd.f32 0.0, %v310
        %312 = vdwg.mxu0
        %313 = vmatprep.subr.mxu0 0.0
        %314 = vmatpush1.xpose.msra.mxu0 %v210
        %315 = vmatprep.subr.mxu0 0.0
        %316 = vmatpush1.xpose.msra.mxu0 %v211
        %317 = vmatprep.subr.mxu0 0.0
        %318 = vmatpush1.xpose.msra.mxu0 %v212
        %319 = vmatprep.subr.mxu0 0.0
        %320 = vmatpush1.xpose.msra.mxu0 %v213
        %321 = vmatprep.subr.mxu0 0.0
        %322 = vmatpush1.xpose.msra.mxu0 %v214
        %323 = vmatprep.subr.mxu0 0.0
        %324 = vmatpush1.xpose.msra.mxu0 %v215
        %325 = vmatprep.subr.mxu0 0.0
        %326 = vmatpush1.xpose.msra.mxu0 %v216
        %327 = vmatprep.subr.mxu0 0.0
        %328 = vmatpush1.xpose.msra.mxu0 %v217
        %329 = vmatprep.subr.mxu0 0.0
        %330 = vmatpush1.xpose.msra.mxu0 %v218
        %331 = vmatprep.subr.mxu0 0.0
        %332 = vmatpush1.xpose.msra.mxu0 %v219
        %333 = vmatprep.subr.mxu0 0.0
        %334 = vmatpush1.xpose.msra.mxu0 %v220
        %335 = vmatprep.subr.mxu0 0.0
        %336 = vmatpush1.xpose.msra.mxu0 %v221
        %337 = vmatprep.subr.mxu0 0.0
        %338 = vmatpush1.xpose.msra.mxu0 %v222
        %339 = vmatprep.subr.mxu0 0.0
        %340 = vmatpush1.xpose.msra.mxu0 %v223
        %341 = vmatprep.subr.mxu0 0.0
        %342 = vmatpush1.xpose.msra.mxu0 %v224
        %343 = vmatprep.subr.mxu0 0.0
        %344 = vmatpush1.xpose.msra.mxu0 %v225
        %345 = vmatprep.subr.mxu0 0.0
        %346 = vmatpush1.xpose.msra.mxu0 %v226
        %347 = vmatprep.subr.mxu0 0.0
        %348 = vmatpush1.xpose.msra.mxu0 %v227
        %349 = vmatprep.subr.mxu0 0.0
        %350 = vmatpush1.xpose.msra.mxu0 %v228
        %351 = vmatprep.subr.mxu0 0.0
        %352 = vmatpush1.xpose.msra.mxu0 %v229
        %353 = vmatprep.subr.mxu0 0.0
        %354 = vmatpush1.xpose.msra.mxu0 %v230
        %355 = vmatprep.subr.mxu0 0.0
        %356 = vmatpush1.xpose.msra.mxu0 %v231
        %357 = vmatprep.subr.mxu0 0.0
        %358 = vmatpush1.xpose.msra.mxu0 %v232
        %359 = vmatprep.subr.mxu0 0.0
        %360 = vmatpush1.xpose.msra.mxu0 %v233
        %361 = vmatprep.subr.mxu0 0.0
        %362 = vmatpush1.xpose.msra.mxu0 %v234
        %363 = vmatprep.subr.mxu0 0.0
        %364 = vmatpush1.xpose.msra.mxu0 %v235
        %365 = vmatprep.subr.mxu0 0.0
        %366 = vmatpush1.xpose.msra.mxu0 %v236
        %367 = vmatprep.subr.mxu0 0.0
        %368 = vmatpush1.xpose.msra.mxu0 %v237
        %369 = vmatprep.subr.mxu0 0.0
        %370 = vmatpush1.xpose.msra.mxu0 %v238
        %371 = vmatprep.subr.mxu0 0.0
        %372 = vmatpush1.xpose.msra.mxu0 %v239
        %373 = vmatprep.subr.mxu0 0.0
        %374 = vmatpush1.xpose.msra.mxu0 %v240
        %375 = vmatprep.subr.mxu0 0.0
        %376 = vmatpush1.xpose.msra.mxu0 %v241
        %377 = vmatprep.mubr.f32.mxu0 0.0
        %378 = vmatmul.mubr.f32.gmra.mrb[0].mxu0 %v177
        %v379 = vpop.f32.mrb[0].mxu0
        %v380 = vadd.f32 0.0, %v379
        %v381 = vpop.f32.mrb[0].mxu0
        %v382 = vadd.f32 0.0, %v381
        %383 = vdwg.mxu0
        %384 = vst [vmem:[%s174] sm:$0xff] %v309
        %385 = vst [vmem:[%s174 + $0x8] sm:$0xff] %v311
        %386 = vst [vmem:[%s174 + $0x10] sm:$0xff] %v380
        %387 = vst [vmem:[%s174 + $0x18] sm:$0xff] %v382
        %s388 = sand.u32 %s75, 1
        %s389 = scalar_lea.sflag [#allocation4], %s388
        %s390 = sand.u32 %s75, 1
        %s391 = smul.addr %s390, 32
        %s392 = scalar_lea.vmem [#allocation7], %s391
        // Predicated region
        $region37: #{tpu_custom_call.1} parent=27 // pred_check
          %p393 = pneg %p85
        $region38: #{tpu_custom_call.1} parent=27 // pred_check_branch
          %395 = sbr.rel (%p393) target = $region40
        $region39: #{tpu_custom_call.1} parent=27 // pred_region
          %s396 = smul.u32 4, %s20
          %s398 = ssub.s32 512, 512
          %399 = vsyncadd %s389, %s398
          %s400 = smul.addr %s396, 128
          %s401 = scalar_lea.hbm %s2, %s400
          %s403 = sshll.u32 %s392, 4
          %s404 = int_to_ptr.vmem [resolvable:$true] %s403
          %406 = dma.vmem_to_hbm [thread:$0]  %s404, 512, %s401, %s389
        $region40: #{tpu_custom_call.1} parent=27 // pred_fallthru
          _
      $region28: #{tpu_custom_call.1} parent=5 // pred_fallthru
        _
      %p407 = scmp.le.s32.totalorder 2, %s15
      // Predicated region
      $region41: #{tpu_custom_call.1} parent=5 // pred_check
        %p408 = pneg %p407
      $region42: #{tpu_custom_call.1} parent=5 // pred_check_branch
        %410 = sbr.rel (%p408) target = $region44
      $region43: #{tpu_custom_call.1} parent=5 // pred_region
        %s411 = ssub.s32 %s15, 2
        // Predicated region
        $region45: #{tpu_custom_call.1} parent=43 // pred_check
          %p412 = pneg %p91
        $region46: #{tpu_custom_call.1} parent=43 // pred_check_branch
          %414 = sbr.rel (%p412) target = $region48
        $region47: #{tpu_custom_call.1} parent=43 // pred_region
          %s415 = sand.u32 %s76, 1
          %s416 = scalar_lea.sflag [#allocation4], %s415
          %s417 = sand.u32 %s76, 1
          %s418 = smul.addr %s417, 32
          %s419 = scalar_lea.vmem [#allocation7], %s418
          %420 = dma.done %s416, 512
        $region48: #{tpu_custom_call.1} parent=43 // pred_fallthru
          _
      $region44: #{tpu_custom_call.1} parent=5 // pred_fallthru
        _
    $region6: #{tpu_custom_call.1} parent=1 // loop_footer
      %s19 = sadd.s32 1, %s15
    $region7: #{tpu_custom_call.1} parent=1 // loop_footer_branch
      %14 = sbr.rel target = $region3
    $region8: #{tpu_custom_call.1} parent=1 // loop_exit
      _
    %421 = vsyncpa [#allocation3], 1
    %s422 = scalar_lea.sflag [#allocation3], 1
    %423 = vsyncpa %s422, 1
    %424 = vsyncpa [#allocation6], 1
    %s425 = scalar_lea.sflag [#allocation6], 1
    %426 = vsyncpa %s425, 1
    %427 = vsyncpa [#allocation4], 1
    %s428 = scalar_lea.sflag [#allocation4], 1
    %429 = vsyncpa %s428, 1

</llo_original>
